<compile_context>
chip_gen: v5e
topology: v5e:2x2
jax: 0.10.0
libtpu: 0.0.40
codegen_flags: <defaults>
</compile_context>

<pallas_src>
import functools

import jax
import jax.numpy as jnp
from jax.experimental import pallas as pl
from jax.experimental.pallas import tpu as pltpu


def _round_up(x, m):
    return ((x + m - 1) // m) * m


def _temp_scaled_linear_kernel(t_ref, x_ref, w_ref, b_ref, o_ref, acc_ref):
    """One (i, k) grid step of: out = (x @ W + b) / temperature.

    t_ref:   (1, 1)   f32 temperature in SMEM
    x_ref:   (TM, TK) bf16 input tile
    w_ref:   (TK, NP) bf16 weight tile (N padded to 128 lanes)
    b_ref:   (1, NP)  f32 bias (padded)
    o_ref:   (TM, NP) f32 output tile (written once, at the last K step)
    acc_ref: (TM, NP) f32 VMEM accumulator (persists across the K axis)
    """
    k = pl.program_id(1)

    @pl.when(k == 0)
    def _():
        acc_ref[...] = jnp.zeros_like(acc_ref)

    # bf16 x bf16 -> f32 accumulation on the MXU.
    acc_ref[...] += jnp.dot(
        x_ref[...], w_ref[...], preferred_element_type=jnp.float32
    )

    @pl.when(k == pl.num_programs(1) - 1)
    def _():
        inv_t = 1.0 / t_ref[0, 0]  # scalar temperature from SMEM
        o_ref[...] = (acc_ref[...] + b_ref[...]) * inv_t


@functools.partial(jax.jit, static_argnames=("tm", "tk"))
def model_with_temperature_forward(x_nchw, w, b, temperature, *, tm=256, tk=512):
    """Forward pass of ModelWithTemperature with a synthetic linear `model`.

    Args:
      x_nchw:      [B, C, H, W] float32 input (NCHW, PyTorch convention).
      w:           [D, num_classes] float32 weight, D = C*H*W.
      b:           [num_classes] float32 bias.
      temperature: [1] float32 temperature parameter.

    Returns:
      [B, num_classes] float32 temperature-scaled logits.
    """
    B = x_nchw.shape[0]
    D, num_classes = w.shape

    # ---- Tile sizing (bf16: sublane tiling 16, lane tiling 128) -------------
    TM = min(tm, _round_up(B, 16))
    TK = min(tk, _round_up(D, 128))
    NP = _round_up(max(num_classes, 128), 128)  # lane-dense output (>=128)

    Bp = _round_up(B, TM)
    Dp = _round_up(D, TK)

    # ---- Operand preparation: flatten, pad, cast to bf16 for streaming -----
    x_flat = x_nchw.reshape(B, D).astype(jnp.bfloat16)
    x_p = jnp.pad(x_flat, ((0, Bp - B), (0, Dp - D)))
    w_p = jnp.pad(w.astype(jnp.bfloat16), ((0, Dp - D), (0, NP - num_classes)))
    b_p = jnp.pad(b.astype(jnp.float32), (0, NP - num_classes)).reshape(1, NP)
    t2d = temperature.reshape(1, 1).astype(jnp.float32)

    grid = (Bp // TM, Dp // TK)

    out_p = pl.pallas_call(
        _temp_scaled_linear_kernel,
        out_shape=jax.ShapeDtypeStruct((Bp, NP), jnp.float32),
        grid_spec=pltpu.PrefetchScalarGridSpec(
            num_scalar_prefetch=0,
            grid=grid,
            in_specs=[
                # Scalar temperature lives whole in SMEM.
                pl.BlockSpec(memory_space=pltpu.MemorySpace.SMEM),
                # Streamed input tile: rows i, K-slice k.
                pl.BlockSpec((TM, TK), lambda i, k: (i, k)),
                # Weight tile: K-slice k, full (padded) N.
                pl.BlockSpec((TK, NP), lambda i, k: (k, 0)),
                # Bias: single small block, reused every step.
                pl.BlockSpec((1, NP), lambda i, k: (0, 0)),
            ],
            out_specs=pl.BlockSpec((TM, NP), lambda i, k: (i, 0)),
            scratch_shapes=[pltpu.VMEM((TM, NP), jnp.float32)],
        ),
        compiler_params=pltpu.CompilerParams(
            dimension_semantics=("parallel", "arbitrary"),
            vmem_limit_bytes=32 * 1024 * 1024,
        ),
    )(t2d, x_p, w_p, b_p)

    # Trim batch / class padding outside the kernel.
    return out_p[:B, :num_classes]


if __name__ == "__main__":
    # Small, deterministic shapes consistent with the module (NCHW input).
    B, C, H, W = 2, 4, 16, 16
    num_classes = 10
    D = C * H * W

    key = jax.random.PRNGKey(0)
    kx, kw, kb = jax.random.split(key, 3)

    x = jax.random.normal(kx, (B, C, H, W), dtype=jnp.float32)
    w = jax.random.normal(kw, (D, num_classes), dtype=jnp.float32) * 0.02
    b = jax.random.normal(kb, (num_classes,), dtype=jnp.float32) * 0.1
    # nn.Parameter(torch.ones(1)) — init 1.0; use 1.5 so the division is
    # observable while remaining deterministic.
    temperature = jnp.array([1.5], dtype=jnp.float32)

    out = model_with_temperature_forward(x, w, b, temperature)
    out = jax.block_until_ready(out)

    # Reference in plain JAX using the same bf16-quantized operands (upcast to
    # f32) so only accumulation-order differences remain.
    x_bf = x.reshape(B, D).astype(jnp.bfloat16).astype(jnp.float32)
    w_bf = w.astype(jnp.bfloat16).astype(jnp.float32)
    ref = (
        jnp.dot(x_bf, w_bf, precision=jax.lax.Precision.HIGHEST) + b
    ) / temperature[0]

    assert out.shape == (B, num_classes)
    assert jnp.allclose(out, ref, atol=2e-2, rtol=2e-2), "mismatch vs reference"

    print("KERNEL_OK")
</pallas_src>

<mosaic_0001>
module attributes {stable_mosaic.version = 11 : i64} {
  func.func @_temp_scaled_linear_kernel(%arg0: i32, %arg1: i32, %arg2: memref<1x1xf32, #tpu.memory_space<smem>>, %arg3: memref<16x512xbf16, #tpu.memory_space<vmem>>, %arg4: memref<512x128xbf16, #tpu.memory_space<vmem>>, %arg5: memref<1x128xf32, #tpu.memory_space<vmem>>, %arg6: memref<16x128xf32, #tpu.memory_space<vmem>>, %arg7: memref<16x128xf32, #tpu.memory_space<vmem>>) attributes {dimension_semantics = [#tpu.dimension_semantics<parallel>, #tpu.dimension_semantics<arbitrary>], iteration_bounds = array<i64: 1, 2>, scalar_prefetch = 0 : i64, scratch_operands = 1 : i64, tpu.core_type = #tpu.core_type<tc>, window_params = [{transform_indices = @transform_0, window_bounds = array<i64: 1, 1>}, {transform_indices = @transform_1, window_bounds = array<i64: 16, 512>}, {transform_indices = @transform_2, window_bounds = array<i64: 512, 128>}, {pipeline_mode = #tpu.pipeline_mode<synchronous>, transform_indices = @transform_3, window_bounds = array<i64: 1, 128>}, {transform_indices = @transform_4, window_bounds = array<i64: 16, 128>}]} {
    %c0_i32 = arith.constant 0 : i32
    %0 = arith.cmpi eq, %arg1, %c0_i32 : i32
    %1 = arith.extui %0 : i1 to i32
    %c0_i32_0 = arith.constant 0 : i32
    %2 = arith.cmpi ne, %1, %c0_i32_0 : i32
    scf.if %2 {
      %cst_9 = arith.constant 0.000000e+00 : f32
      %12 = vector.broadcast %cst_9 : f32 to vector<16x128xf32>
      %c0_10 = arith.constant 0 : index
      %c0_11 = arith.constant 0 : index
      %13 = vector.load %arg7[%c0_10, %c0_11] : memref<16x128xf32, #tpu.memory_space<vmem>>, vector<16x128xf32>
      tpu.vector_store %arg7[%c0_10, %c0_11], %12 {strides = array<i32>} : memref<16x128xf32, #tpu.memory_space<vmem>>, vector<16x128xf32>,
    } else {
    }
    %c0 = arith.constant 0 : index
    %c0_1 = arith.constant 0 : index
    %3 = vector.load %arg7[%c0, %c0_1] : memref<16x128xf32, #tpu.memory_space<vmem>>, vector<16x128xf32>
    %c0_2 = arith.constant 0 : index
    %c0_3 = arith.constant 0 : index
    %4 = vector.load %arg3[%c0_2, %c0_3] : memref<16x512xbf16, #tpu.memory_space<vmem>>, vector<16x512xbf16>
    %c0_4 = arith.constant 0 : index
    %c0_5 = arith.constant 0 : index
    %5 = vector.load %arg4[%c0_4, %c0_5] : memref<512x128xbf16, #tpu.memory_space<vmem>>, vector<512x128xbf16>
    %cst = arith.constant dense<0.000000e+00> : vector<16x128xf32>
    %6 = tpu.matmul %4, %5, %cst {dimension_numbers = #tpu.dot_dimension_numbers<[1], [0], [0], [1], [0, 0, 1, 1], [], []>} : vector<16x512xbf16>, vector<512x128xbf16>, vector<16x128xf32> -> vector<16x128xf32>
    %7 = arith.addf %3, %6 : vector<16x128xf32>
    %c0_6 = arith.constant 0 : index
    %c0_7 = arith.constant 0 : index
    %8 = vector.load %arg7[%c0_6, %c0_7] : memref<16x128xf32, #tpu.memory_space<vmem>>, vector<16x128xf32>
    tpu.vector_store %arg7[%c0_6, %c0_7], %7 {strides = array<i32>} : memref<16x128xf32, #tpu.memory_space<vmem>>, vector<16x128xf32>,
    %c1_i32 = arith.constant 1 : i32
    %9 = arith.cmpi eq, %arg1, %c1_i32 : i32
    %10 = arith.extui %9 : i1 to i32
    %c0_i32_8 = arith.constant 0 : i32
    %11 = arith.cmpi ne, %10, %c0_i32_8 : i32
    scf.if %11 {
      %c0_9 = arith.constant 0 : index
      %c0_10 = arith.constant 0 : index
      %12 = memref.load %arg2[%c0_9, %c0_10] : memref<1x1xf32, #tpu.memory_space<smem>>
      %cst_11 = arith.constant 1.000000e+00 : f32
      %13 = arith.divf %cst_11, %12 : f32
      %c0_12 = arith.constant 0 : index
      %c0_13 = arith.constant 0 : index
      %14 = vector.load %arg7[%c0_12, %c0_13] : memref<16x128xf32, #tpu.memory_space<vmem>>, vector<16x128xf32>
      %c0_14 = arith.constant 0 : index
      %c0_15 = arith.constant 0 : index
      %15 = vector.load %arg5[%c0_14, %c0_15] : memref<1x128xf32, #tpu.memory_space<vmem>>, vector<1x128xf32>
      %16 = vector.broadcast %15 : vector<1x128xf32> to vector<16x128xf32>
      %17 = arith.addf %14, %16 : vector<16x128xf32>
      %18 = vector.broadcast %13 : f32 to vector<16x128xf32>
      %19 = arith.mulf %17, %18 : vector<16x128xf32>
      %c0_16 = arith.constant 0 : index
      %c0_17 = arith.constant 0 : index
      %20 = vector.load %arg6[%c0_16, %c0_17] : memref<16x128xf32, #tpu.memory_space<vmem>>, vector<16x128xf32>
      tpu.vector_store %arg6[%c0_16, %c0_17], %19 {strides = array<i32>} : memref<16x128xf32, #tpu.memory_space<vmem>>, vector<16x128xf32>,
    } else {
    }
    return
  }
  func.func @transform_0(%arg0: i32, %arg1: i32) -> (i32, i32) {
    %c0_i32 = arith.constant 0 : i32
    %c0_i32_0 = arith.constant 0 : i32
    %c0_i32_1 = arith.constant 0 : i32
    return %c0_i32, %c0_i32_0 : i32, i32
  }
  func.func @transform_1(%arg0: i32, %arg1: i32) -> (i32, i32) {
    %c0_i32 = arith.constant 0 : i32
    return %arg0, %arg1 : i32, i32
  }
  func.func @transform_2(%arg0: i32, %arg1: i32) -> (i32, i32) {
    %c0_i32 = arith.constant 0 : i32
    %c0_i32_0 = arith.constant 0 : i32
    return %arg1, %c0_i32 : i32, i32
  }
  func.func @transform_3(%arg0: i32, %arg1: i32) -> (i32, i32) {
    %c0_i32 = arith.constant 0 : i32
    %c0_i32_0 = arith.constant 0 : i32
    %c0_i32_1 = arith.constant 0 : i32
    return %c0_i32, %c0_i32_0 : i32, i32
  }
  func.func @transform_4(%arg0: i32, %arg1: i32) -> (i32, i32) {
    %c0_i32 = arith.constant 0 : i32
    %c0_i32_0 = arith.constant 0 : i32
    return %arg0, %c0_i32 : i32, i32
  }
}

</mosaic_0001>

<llo_original>
// kernel: model_with_temperature_forward.1
$region0: #{model_with_temperature_forward.1}
  #allocation0 [shape = 'u32[]', space=smem, size = 0x4, offset = 0x4, fixed_abs, tag = 'smem constant byte address 0x4 - core index']
  #allocation1 [shape = 'u32[72,128]{1,0:T(1,128)}', space=vmem, size = 0x9000, scoped, tag = 'internal scratch']
  #allocation2 [shape = 'f32[16,128]{1,0:T(8,128)}', space=vmem, size = 0x2000, scoped, tag = 'scratch operand']
  #allocation3 [shape = 'f32[1,1]{1,0:T(1,128)S(6)}', space=smem, size = 0x200, scoped, tag = 'scoped memory for model_with_temperature_forward.1']
  %s0 = inlined_call_operand.<no memory space> [shape: f32[1,1], index: 0, kind: input, shape index: {}]
  %s1 = inlined_call_operand.vmem [shape: bf16[16,1024], index: 1, kind: input, shape index: {}]
  %s2 = inlined_call_operand.vmem [shape: bf16[1024,128], index: 2, kind: input, shape index: {}]
  %s3 = inlined_call_operand.vmem [shape: f32[1,128], index: 3, kind: input, shape index: {}]
  %s4 = inlined_call_operand.vmem [shape: f32[16,128], index: 4, kind: output, shape index: {}]
  %s5 = sld [smem:[#allocation0]]
  $region80: #{model_with_temperature_forward.1} parent=0
    _
  %s7 = ssub.s32 1, %s5
  %s8 = scalar_select 0, %s7, %s5
  %9 = sst [smem:[#allocation3]] %s0
  $region1: #{model_with_temperature_forward.1} parent=0
    #allocation4 [shape = 'u8[32768]{0}', space=vmem, size = 0x8000, scoped, tag = 'input window, operand 1']
    loop: start=0, step=1, limit=4
    $region2: #{model_with_temperature_forward.1} parent=1 // loop_pre_header
      _
    $region3: #{model_with_temperature_forward.1} parent=1 // loop_header
      %s11 = sphi 0, %s15
      %p12 = scmp.ge.s32.totalorder %s11, 4
      %s18 = sphi 0, %s30
      %s19 = sphi 0, %s26
      %s20 = sphi 0, %s18
      %s21 = sphi 0, %s19
      %s22 = sphi 0, %s20
      %s23 = sphi 0, %s21
      %s31 = sphi 0, %s31
      %s33 = sphi 0, %s31
      %s34 = sphi 0, %s33
      %s48 = sphi 0, %s34
      %s56 = sphi 0, %s58
      %s59 = sphi 0, %s56
      %s60 = sphi 0, %s59
      %s76 = sphi 0, %s60
      %s82 = sphi 0, %s84
      %s85 = sphi 0, %s82
      %s86 = sphi 0, %s85
      %s102 = sphi 0, %s86
      %s106 = sphi 0, %s106
      %s108 = sphi 0, %s106
      %s109 = sphi 0, %s108
      %s123 = sphi 0, %s109
      %s129 = sphi 0, %s131
      %s132 = sphi 0, %s129
      %s133 = sphi 0, %s132
      %s149 = sphi 0, %s133
    $region4: #{model_with_temperature_forward.1} parent=1 // loop_header_branch
      %14 = sbr.rel (%p12) target = $region8
    $region5: #{model_with_temperature_forward.1} parent=1 // loop_body
      %s16 = ssub.s32 %s11, 1
      %s17 = ssub.s32 %s11, 2
      %s24 = sadd.s32 1, %s19
      %p25 = scmp.ge.s32.totalorder %s24, 2
      %s26 = scalar_select %p25, 0, %s24
      %s27 = sadd.s32 1, %s18
      %s28 = scalar_select %p25, %s27, %s18
      %p29 = scmp.ge.s32.totalorder %s28, 1
      %s30 = scalar_select %p29, 0, %s28
      %s32 = sadd.s32 %s31, 1
      %p35 = scmp.eq.s32.totalorder %s11, 1
      %p36 = scmp.ne.s32.totalorder %s31, %s33
      %p37 = scmp.eq.s32.totalorder %s11, 0
      %p38 = por %p36, %p37
      %p39 = scmp.ne.s32.totalorder %s31, %s33
      %p40 = scmp.eq.s32.totalorder %s16, 1
      %p41 = por %p39, %p40
      %p42 = scmp.ne.s32.totalorder %s33, %s34
      %p43 = scmp.eq.s32.totalorder %s16, 0
      %p44 = por %p42, %p43
      %p45 = scmp.ne.s32.totalorder %s33, %s34
      %p46 = scmp.eq.s32.totalorder %s17, 1
      %p47 = por %p45, %p46
      %p49 = scmp.ne.s32.totalorder %s34, %s48
      %p50 = scmp.eq.s32.totalorder %s17, 0
      %p51 = por %p49, %p50
      %s52 = ssub.s32 %s18, %s30
      %s53 = ssub.s32 %s19, %s26
      %s54 = sor.u32 %s52, %s53
      %p55 = scmp.eq.s32.totalorder %s54, 0
      %s57 = sadd.s32 %s56, 1
      %s58 = scalar_select %p55, %s56, %s57
      %p61 = pneg %p55
      %p62 = scmp.eq.s32.totalorder %s11, 1
      %p63 = por %p61, %p62
      %p64 = scmp.ne.s32.totalorder %s56, %s59
      %p65 = scmp.eq.s32.totalorder %s11, 0
      %p66 = por %p64, %p65
      %p67 = scmp.ne.s32.totalorder %s56, %s59
      %p68 = scmp.eq.s32.totalorder %s16, 1
      %p69 = por %p67, %p68
      %p70 = scmp.ne.s32.totalorder %s59, %s60
      %p71 = scmp.eq.s32.totalorder %s16, 0
      %p72 = por %p70, %p71
      %p73 = scmp.ne.s32.totalorder %s59, %s60
      %p74 = scmp.eq.s32.totalorder %s17, 1
      %p75 = por %p73, %p74
      %p77 = scmp.ne.s32.totalorder %s60, %s76
      %p78 = scmp.eq.s32.totalorder %s17, 0
      %p79 = por %p77, %p78
      %s80 = ssub.s32 %s19, %s26
      %p81 = scmp.eq.s32.totalorder %s80, 0
      %s83 = sadd.s32 %s82, 1
      %s84 = scalar_select %p81, %s82, %s83
      %p87 = pneg %p81
      %p88 = scmp.eq.s32.totalorder %s11, 1
      %p89 = por %p87, %p88
      %p90 = scmp.ne.s32.totalorder %s82, %s85
      %p91 = scmp.eq.s32.totalorder %s11, 0
      %p92 = por %p90, %p91
      %p93 = scmp.ne.s32.totalorder %s82, %s85
      %p94 = scmp.eq.s32.totalorder %s16, 1
      %p95 = por %p93, %p94
      %p96 = scmp.ne.s32.totalorder %s85, %s86
      %p97 = scmp.eq.s32.totalorder %s16, 0
      %p98 = por %p96, %p97
      %p99 = scmp.ne.s32.totalorder %s85, %s86
      %p100 = scmp.eq.s32.totalorder %s17, 1
      %p101 = por %p99, %p100
      %p103 = scmp.ne.s32.totalorder %s86, %s102
      %p104 = scmp.eq.s32.totalorder %s17, 0
      %p105 = por %p103, %p104
      %s107 = sadd.s32 %s106, 1
      %p110 = scmp.eq.s32.totalorder %s11, 1
      %p111 = scmp.ne.s32.totalorder %s106, %s108
      %p112 = scmp.eq.s32.totalorder %s11, 0
      %p113 = por %p111, %p112
      %p114 = scmp.ne.s32.totalorder %s106, %s108
      %p115 = scmp.eq.s32.totalorder %s16, 1
      %p116 = por %p114, %p115
      %p117 = scmp.ne.s32.totalorder %s108, %s109
      %p118 = scmp.eq.s32.totalorder %s16, 0
      %p119 = por %p117, %p118
      %p120 = scmp.ne.s32.totalorder %s108, %s109
      %p121 = scmp.eq.s32.totalorder %s17, 1
      %p122 = por %p120, %p121
      %p124 = scmp.ne.s32.totalorder %s109, %s123
      %p125 = scmp.eq.s32.totalorder %s17, 0
      %p126 = por %p124, %p125
      %s127 = ssub.s32 %s18, %s30
      %p128 = scmp.eq.s32.totalorder %s127, 0
      %s130 = sadd.s32 %s129, 1
      %s131 = scalar_select %p128, %s129, %s130
      %p134 = pneg %p128
      %p135 = scmp.eq.s32.totalorder %s11, 1
      %p136 = por %p134, %p135
      %p137 = scmp.ne.s32.totalorder %s129, %s132
      %p138 = scmp.eq.s32.totalorder %s11, 0
      %p139 = por %p137, %p138
      %p140 = scmp.ne.s32.totalorder %s129, %s132
      %p141 = scmp.eq.s32.totalorder %s16, 1
      %p142 = por %p140, %p141
      %p143 = scmp.ne.s32.totalorder %s132, %s133
      %p144 = scmp.eq.s32.totalorder %s16, 0
      %p145 = por %p143, %p144
      %p146 = scmp.ne.s32.totalorder %s132, %s133
      %p147 = scmp.eq.s32.totalorder %s17, 1
      %p148 = por %p146, %p147
      %p150 = scmp.ne.s32.totalorder %s133, %s149
      %p151 = scmp.eq.s32.totalorder %s17, 0
      %p152 = por %p150, %p151
      %p153 = scmp.le.s32.totalorder 1, %s11
      %p154 = scmp.lt.s32.totalorder %s11, 3
      %p155 = pnand %p153, %p154
      %p156 = pneg %p155
      // Predicated region
      $region9: #{model_with_temperature_forward.1} parent=5 // pred_check
        _
      $region10: #{model_with_temperature_forward.1} parent=5 // pred_check_branch
        %158 = sbr.rel (%p155) target = $region12
      $region11: #{model_with_temperature_forward.1} parent=5 // pred_region
        %s159 = ssub.s32 %s11, 1
        // Predicated region
        $region13: #{model_with_temperature_forward.1} parent=11 // pred_check
          %p160 = pneg %p44
        $region14: #{model_with_temperature_forward.1} parent=11 // pred_check_branch
          %162 = sbr.rel (%p160) target = $region16
        $region15: #{model_with_temperature_forward.1} parent=11 // pred_region
          _
        $region16: #{model_with_temperature_forward.1} parent=11 // pred_fallthru
          _
        // Predicated region
        $region17: #{model_with_temperature_forward.1} parent=11 // pred_check
          %p163 = pneg %p119
        $region18: #{model_with_temperature_forward.1} parent=11 // pred_check_branch
          %165 = sbr.rel (%p163) target = $region20
        $region19: #{model_with_temperature_forward.1} parent=11 // pred_region
          _
        $region20: #{model_with_temperature_forward.1} parent=11 // pred_fallthru
          _
      $region12: #{model_with_temperature_forward.1} parent=5 // pred_fallthru
        _
      %p166 = scmp.lt.s32.totalorder %s11, 2
      // Predicated region
      $region21: #{model_with_temperature_forward.1} parent=5 // pred_check
        %p167 = pneg %p166
      $region22: #{model_with_temperature_forward.1} parent=5 // pred_check_branch
        %169 = sbr.rel (%p167) target = $region24
      $region23: #{model_with_temperature_forward.1} parent=5 // pred_region
        // Predicated region
        $region25: #{model_with_temperature_forward.1} parent=23 // pred_check
          %p170 = pneg %p66
        $region26: #{model_with_temperature_forward.1} parent=23 // pred_check_branch
          %172 = sbr.rel (%p170) target = $region28
        $region27: #{model_with_temperature_forward.1} parent=23 // pred_region
          %s173 = sand.u32 %s56, 1
          %s174 = sand.u32 %s56, 1
          %s175 = smul.addr %s174, 32
          %s176 = scalar_lea.vmem [#allocation4], %s175
          %s177 = smul.u32 2, %s18
          %s178 = smul.u32 4, %s19
          %s179 = smul.addr %s177, 8
          %s180 = sadd.s32 %s178, %s179
          %s181 = smul.addr %s180, 4
          %s182 = scalar_lea.vmem %s1, %s181
          // Predicated region
          $region29: #{model_with_temperature_forward.1} parent=27 // pred_check
            _
          $region30: #{model_with_temperature_forward.1} parent=27 // pred_check_branch
            %184 = sbr.rel (0) target = $region32
          $region31: #{model_with_temperature_forward.1} parent=27 // pred_region
            // Predicated region
            $region33: #{model_with_temperature_forward.1} parent=31 // pred_check
              _
            $region34: #{model_with_temperature_forward.1} parent=31 // pred_check_branch
              %186 = sbr.rel (0) target = $region36
            $region35: #{model_with_temperature_forward.1} parent=31 // pred_region
              loop: start=0, step=1, limit=1
              $region37: #{model_with_temperature_forward.1} parent=35 // loop_pre_header
                _
              $region38: #{model_with_temperature_forward.1} parent=35 // loop_header
                %s188 = sphi 0, %s192
                %p189 = scmp.ge.s32.totalorder %s188, 1
                %s193 = sphi %s182, %s182
                %s194 = sphi %s176, %s176
              $region39: #{model_with_temperature_forward.1} parent=35 // loop_header_branch
                %191 = sbr.rel (%p189) target = $region43
              $region40: #{model_with_temperature_forward.1} parent=35 // loop_body
                %v195 = vld [vmem:[%s193] sm:$0xff]
                %196 = vst [vmem:[%s194] sm:$0xff] %v195
                %v197 = vld [vmem:[%s193 + $0x8] sm:$0xff]
                %198 = vst [vmem:[%s194 + $0x8] sm:$0xff] %v197
                %v199 = vld [vmem:[%s193 + $0x20] sm:$0xff]
                %200 = vst [vmem:[%s194 + $0x10] sm:$0xff] %v199
                %v201 = vld [vmem:[%s193 + $0x28] sm:$0xff]
                %202 = vst [vmem:[%s194 + $0x18] sm:$0xff] %v201
              $region41: #{model_with_temperature_forward.1} parent=35 // loop_footer
                %s192 = sadd.s32 1, %s188
              $region42: #{model_with_temperature_forward.1} parent=35 // loop_footer_branch
                %187 = sbr.rel target = $region38
              $region43: #{model_with_temperature_forward.1} parent=35 // loop_exit
                _
            $region36: #{model_with_temperature_forward.1} parent=31 // pred_fallthru
              _
            // Predicated region
            $region44: #{model_with_temperature_forward.1} parent=31 // pred_check
              _
            $region45: #{model_with_temperature_forward.1} parent=31 // pred_check_branch
              %204 = sbr.rel target = $region47
            $region46: #{model_with_temperature_forward.1} parent=31 // pred_region
              _
            $region47: #{model_with_temperature_forward.1} parent=31 // pred_fallthru
              _
          $region32: #{model_with_temperature_forward.1} parent=27 // pred_fallthru
            _
          %205 = vnop
        $region28: #{model_with_temperature_forward.1} parent=23 // pred_fallthru
          _
        // Predicated region
        $region48: #{model_with_temperature_forward.1} parent=23 // pred_check
          %p206 = pneg %p92
        $region49: #{model_with_temperature_forward.1} parent=23 // pred_check_branch
          %208 = sbr.rel (%p206) target = $region51
        $region50: #{model_with_temperature_forward.1} parent=23 // pred_region
          %s209 = smul.u32 64, %s19
          %p210 = scmp.lt.s32.totalorder %s209, 127
          %s211 = scalar_select %p210, %s209, 127
          %s212 = smul.addr %s211, 4
          %s213 = scalar_lea.vmem %s2, %s212
          %s214 = smul.u32 64, %s19
        $region51: #{model_with_temperature_forward.1} parent=23 // pred_fallthru
          _
      $region24: #{model_with_temperature_forward.1} parent=5 // pred_fallthru
        _
      %p215 = scmp.le.s32.totalorder 1, %s11
      %p216 = scmp.lt.s32.totalorder %s11, 3
      %p217 = pnand %p215, %p216
      %p218 = pneg %p217
      // Predicated region
      $region52: #{model_with_temperature_forward.1} parent=5 // pred_check
        _
      $region53: #{model_with_temperature_forward.1} parent=5 // pred_check_branch
        %220 = sbr.rel (%p217) target = $region55
      $region54: #{model_with_temperature_forward.1} parent=5 // pred_region
        %s221 = ssub.s32 %s11, 1
        %s222 = sand.u32 %s59, 1
        %s223 = sand.u32 %s59, 1
        %s224 = smul.addr %s223, 32
        %s225 = scalar_lea.vmem [#allocation4], %s224
        // Predicated region
        $region56: #{model_with_temperature_forward.1} parent=54 // pred_check
          %p226 = pneg %p72
        $region57: #{model_with_temperature_forward.1} parent=54 // pred_check_branch
          %228 = sbr.rel (%p226) target = $region59
        $region58: #{model_with_temperature_forward.1} parent=54 // pred_region
          _
        $region59: #{model_with_temperature_forward.1} parent=54 // pred_fallthru
          _
        %p229 = pneg %p44
        %p230 = pneg %p41
        %s231 = sand.u32 %s59, 1
        %s232 = sand.u32 %s59, 1
        %s233 = smul.addr %s232, 32
        %s234 = scalar_lea.vmem [#allocation4], %s233
        %p235 = pneg %p72
        %p236 = pneg %p69
        %s237 = smul.u32 64, %s21
        %p238 = scmp.lt.s32.totalorder %s237, 127
        %s239 = scalar_select %p238, %s237, 127
        %s240 = smul.addr %s239, 4
        %s241 = scalar_lea.vmem %s2, %s240
        %p242 = pneg %p98
        %p243 = pneg %p95
        %p244 = pneg %p119
        %p245 = pneg %p116
        %p246 = pneg %p145
        %p247 = pneg %p142
        %s248 = smul.u32 2, %s20
        %p249 = scmp.lt.s32.totalorder %s248, 1
        %s250 = scalar_select %p249, %s248, 1
        %s251 = smul.addr %s250, 8
        %s252 = scalar_lea.vmem %s4, %s251
        %s253 = smul.u32 2, %s20
        %s254 = smul.u32 4, %s21
        %s255 = smul.u32 64, %s21
        %p256 = scmp.lt.s32.totalorder %s255, 127
        %s257 = scalar_select %p256, %s255, 127
        %s258 = smul.addr %s257, 4
        %s259 = scalar_lea.vmem %s2, %s258
        %s260 = smul.u32 64, %s21
        %s261 = smul.u32 2, %s20
        %p262 = scmp.lt.s32.totalorder %s261, 1
        %s263 = scalar_select %p262, %s261, 1
        %s264 = smul.addr %s263, 8
        %s265 = scalar_lea.vmem %s4, %s264
        %s266 = smul.u32 2, %s20
        %p267 = scmp.eq.s32.totalorder %s21, 0
        // Predicated region
        $region60: #{model_with_temperature_forward.1} parent=54 // pred_check
          %p268 = pneg %p267
        $region61: #{model_with_temperature_forward.1} parent=54 // pred_check_branch
          %270 = sbr.rel (%p268) target = $region63
        $region62: #{model_with_temperature_forward.1} parent=54 // pred_region
          %271 = vst [vmem:[#allocation2] sm:$0xff] 0.0
          %272 = vst [vmem:[#allocation2 + $0x8] sm:$0xff] 0.0
        $region63: #{model_with_temperature_forward.1} parent=54 // pred_fallthru
          _
        %v273 = vld [vmem:[#allocation2] sm:$0xff]
        %v274 = vld [vmem:[#allocation2 + $0x8] sm:$0xff]
        %v275 = vld [vmem:[%s225] sm:$0xff]
        %v276 = vld [vmem:[%s225 + $0x8] sm:$0xff]
        %v277 = vld [vmem:[%s225 + $0x10] sm:$0xff]
        %v278 = vld [vmem:[%s225 + $0x18] sm:$0xff]
        %v279 = vld [vmem:[%s259] sm:$0xf]
        %v280 = vld [vmem:[%s259 + $0x4] sm:$0xf]
        %v281 = vld [vmem:[%s259 + $0x8] sm:$0xf]
        %v282 = vld [vmem:[%s259 + $0xc] sm:$0xf]
        %v283 = vld [vmem:[%s259 + $0x10] sm:$0xf]
        %v284 = vld [vmem:[%s259 + $0x14] sm:$0xf]
        %v285 = vld [vmem:[%s259 + $0x18] sm:$0xf]
        %v286 = vld [vmem:[%s259 + $0x1c] sm:$0xf]
        %v287 = vld [vmem:[%s259 + $0x20] sm:$0xf]
        %v288 = vld [vmem:[%s259 + $0x24] sm:$0xf]
        %v289 = vld [vmem:[%s259 + $0x28] sm:$0xf]
        %v290 = vld [vmem:[%s259 + $0x2c] sm:$0xf]
        %v291 = vld [vmem:[%s259 + $0x30] sm:$0xf]
        %v292 = vld [vmem:[%s259 + $0x34] sm:$0xf]
        %v293 = vld [vmem:[%s259 + $0x38] sm:$0xf]
        %v294 = vld [vmem:[%s259 + $0x3c] sm:$0xf]
        %v295 = vld [vmem:[%s259 + $0x40] sm:$0xf]
        %v296 = vld [vmem:[%s259 + $0x44] sm:$0xf]
        %v297 = vld [vmem:[%s259 + $0x48] sm:$0xf]
        %v298 = vld [vmem:[%s259 + $0x4c] sm:$0xf]
        %v299 = vld [vmem:[%s259 + $0x50] sm:$0xf]
        %v300 = vld [vmem:[%s259 + $0x54] sm:$0xf]
        %v301 = vld [vmem:[%s259 + $0x58] sm:$0xf]
        %v302 = vld [vmem:[%s259 + $0x5c] sm:$0xf]
        %v303 = vld [vmem:[%s259 + $0x60] sm:$0xf]
        %v304 = vld [vmem:[%s259 + $0x64] sm:$0xf]
        %v305 = vld [vmem:[%s259 + $0x68] sm:$0xf]
        %v306 = vld [vmem:[%s259 + $0x6c] sm:$0xf]
        %v307 = vld [vmem:[%s259 + $0x70] sm:$0xf]
        %v308 = vld [vmem:[%s259 + $0x74] sm:$0xf]
        %v309 = vld [vmem:[%s259 + $0x78] sm:$0xf]
        %v310 = vld [vmem:[%s259 + $0x7c] sm:$0xf]
        %v311 = vld [vmem:[%s259 + $0x80] sm:$0xf]
        %v312 = vld [vmem:[%s259 + $0x84] sm:$0xf]
        %v313 = vld [vmem:[%s259 + $0x88] sm:$0xf]
        %v314 = vld [vmem:[%s259 + $0x8c] sm:$0xf]
        %v315 = vld [vmem:[%s259 + $0x90] sm:$0xf]
        %v316 = vld [vmem:[%s259 + $0x94] sm:$0xf]
        %v317 = vld [vmem:[%s259 + $0x98] sm:$0xf]
        %v318 = vld [vmem:[%s259 + $0x9c] sm:$0xf]
        %v319 = vld [vmem:[%s259 + $0xa0] sm:$0xf]
        %v320 = vld [vmem:[%s259 + $0xa4] sm:$0xf]
        %v321 = vld [vmem:[%s259 + $0xa8] sm:$0xf]
        %v322 = vld [vmem:[%s259 + $0xac] sm:$0xf]
        %v323 = vld [vmem:[%s259 + $0xb0] sm:$0xf]
        %v324 = vld [vmem:[%s259 + $0xb4] sm:$0xf]
        %v325 = vld [vmem:[%s259 + $0xb8] sm:$0xf]
        %v326 = vld [vmem:[%s259 + $0xbc] sm:$0xf]
        %v327 = vld [vmem:[%s259 + $0xc0] sm:$0xf]
        %v328 = vld [vmem:[%s259 + $0xc4] sm:$0xf]
        %v329 = vld [vmem:[%s259 + $0xc8] sm:$0xf]
        %v330 = vld [vmem:[%s259 + $0xcc] sm:$0xf]
        %v331 = vld [vmem:[%s259 + $0xd0] sm:$0xf]
        %v332 = vld [vmem:[%s259 + $0xd4] sm:$0xf]
        %v333 = vld [vmem:[%s259 + $0xd8] sm:$0xf]
        %v334 = vld [vmem:[%s259 + $0xdc] sm:$0xf]
        %v335 = vld [vmem:[%s259 + $0xe0] sm:$0xf]
        %v336 = vld [vmem:[%s259 + $0xe4] sm:$0xf]
        %v337 = vld [vmem:[%s259 + $0xe8] sm:$0xf]
        %v338 = vld [vmem:[%s259 + $0xec] sm:$0xf]
        %v339 = vld [vmem:[%s259 + $0xf0] sm:$0xf]
        %v340 = vld [vmem:[%s259 + $0xf4] sm:$0xf]
        %v341 = vld [vmem:[%s259 + $0xf8] sm:$0xf]
        %v342 = vld [vmem:[%s259 + $0xfc] sm:$0xf]
        %v347 = vunpack.c.l.b16 %v275
        %v348 = vunpack.c.h.b16 %v275
        %v349 = vunpack.c.l.b16 %v276
        %v350 = vunpack.c.h.b16 %v276
        %v351 = vunpack.c.l.b16 %v277
        %v352 = vunpack.c.h.b16 %v277
        %v353 = vunpack.c.l.b16 %v278
        %v354 = vunpack.c.h.b16 %v278
        %v355 = vpack.c.b16 %v351, %v347
        %v356 = vpack.c.b16 %v352, %v348
        %v357 = vpack.c.b16 %v353, %v349
        %v358 = vpack.c.b16 %v354, %v350
        %v427 = vunpack.c.l.b16 %v279
        %v428 = vunpack.c.l.b16 %v280
        %v429 = vunpack.c.l.b16 %v281
        %v430 = vunpack.c.l.b16 %v282
        %v431 = vunpack.c.l.b16 %v283
        %v432 = vunpack.c.l.b16 %v284
        %v433 = vunpack.c.l.b16 %v285
        %v434 = vunpack.c.l.b16 %v286
        %v435 = vunpack.c.l.b16 %v287
        %v436 = vunpack.c.l.b16 %v288
        %v437 = vunpack.c.l.b16 %v289
        %v438 = vunpack.c.l.b16 %v290
        %v439 = vunpack.c.l.b16 %v291
        %v440 = vunpack.c.l.b16 %v292
        %v441 = vunpack.c.l.b16 %v293
        %v442 = vunpack.c.l.b16 %v294
        %v443 = vunpack.c.l.b16 %v295
        %v444 = vunpack.c.l.b16 %v296
        %v445 = vunpack.c.l.b16 %v297
        %v446 = vunpack.c.l.b16 %v298
        %v447 = vunpack.c.l.b16 %v299
        %v448 = vunpack.c.l.b16 %v300
        %v449 = vunpack.c.l.b16 %v301
        %v450 = vunpack.c.l.b16 %v302
        %v451 = vunpack.c.l.b16 %v303
        %v452 = vunpack.c.l.b16 %v304
        %v453 = vunpack.c.l.b16 %v305
        %v454 = vunpack.c.l.b16 %v306
        %v455 = vunpack.c.l.b16 %v307
        %v456 = vunpack.c.l.b16 %v308
        %v457 = vunpack.c.l.b16 %v309
        %v458 = vunpack.c.l.b16 %v310
        %v459 = vunpack.c.l.b16 %v311
        %v460 = vunpack.c.l.b16 %v312
        %v461 = vunpack.c.l.b16 %v313
        %v462 = vunpack.c.l.b16 %v314
        %v463 = vunpack.c.l.b16 %v315
        %v464 = vunpack.c.l.b16 %v316
        %v465 = vunpack.c.l.b16 %v317
        %v466 = vunpack.c.l.b16 %v318
        %v467 = vunpack.c.l.b16 %v319
        %v468 = vunpack.c.l.b16 %v320
        %v469 = vunpack.c.l.b16 %v321
        %v470 = vunpack.c.l.b16 %v322
        %v471 = vunpack.c.l.b16 %v323
        %v472 = vunpack.c.l.b16 %v324
        %v473 = vunpack.c.l.b16 %v325
        %v474 = vunpack.c.l.b16 %v326
        %v475 = vunpack.c.l.b16 %v327
        %v476 = vunpack.c.l.b16 %v328
        %v477 = vunpack.c.l.b16 %v329
        %v478 = vunpack.c.l.b16 %v330
        %v479 = vunpack.c.l.b16 %v331
        %v480 = vunpack.c.l.b16 %v332
        %v481 = vunpack.c.l.b16 %v333
        %v482 = vunpack.c.l.b16 %v334
        %v483 = vunpack.c.l.b16 %v335
        %v484 = vunpack.c.l.b16 %v336
        %v485 = vunpack.c.l.b16 %v337
        %v486 = vunpack.c.l.b16 %v338
        %v487 = vunpack.c.l.b16 %v339
        %v488 = vunpack.c.l.b16 %v340
        %v489 = vunpack.c.l.b16 %v341
        %v490 = vunpack.c.l.b16 %v342
        %v491 = vpack.c.b16 %v428, %v427
        %v492 = vpack.c.b16 %v430, %v429
        %v493 = vpack.c.b16 %v432, %v431
        %v494 = vpack.c.b16 %v434, %v433
        %v495 = vpack.c.b16 %v436, %v435
        %v496 = vpack.c.b16 %v438, %v437
        %v497 = vpack.c.b16 %v440, %v439
        %v498 = vpack.c.b16 %v442, %v441
        %v499 = vpack.c.b16 %v444, %v443
        %v500 = vpack.c.b16 %v446, %v445
        %v501 = vpack.c.b16 %v448, %v447
        %v502 = vpack.c.b16 %v450, %v449
        %v503 = vpack.c.b16 %v452, %v451
        %v504 = vpack.c.b16 %v454, %v453
        %v505 = vpack.c.b16 %v456, %v455
        %v506 = vpack.c.b16 %v458, %v457
        %v507 = vpack.c.b16 %v460, %v459
        %v508 = vpack.c.b16 %v462, %v461
        %v509 = vpack.c.b16 %v464, %v463
        %v510 = vpack.c.b16 %v466, %v465
        %v511 = vpack.c.b16 %v468, %v467
        %v512 = vpack.c.b16 %v470, %v469
        %v513 = vpack.c.b16 %v472, %v471
        %v514 = vpack.c.b16 %v474, %v473
        %v515 = vpack.c.b16 %v476, %v475
        %v516 = vpack.c.b16 %v478, %v477
        %v517 = vpack.c.b16 %v480, %v479
        %v518 = vpack.c.b16 %v482, %v481
        %v519 = vpack.c.b16 %v484, %v483
        %v520 = vpack.c.b16 %v486, %v485
        %v521 = vpack.c.b16 %v488, %v487
        %v522 = vpack.c.b16 %v490, %v489
        %555 = vmatpush.bf16.msra.mxu0 %v498
        %556 = vmatpush.bf16.msra.mxu0 %v497
        %557 = vmatpush.bf16.msra.mxu0 %v496
        %558 = vmatpush.bf16.msra.mxu0 %v495
        %559 = vmatpush.bf16.msra.mxu0 %v494
        %560 = vmatpush.bf16.msra.mxu0 %v493
        %561 = vmatpush.bf16.msra.mxu0 %v492
        %562 = vmatpush.bf16.msra.mxu0 %v491
        %563 = vmatmul.bf16.gmra.mxu0 %v355
        %v564 = vpop.f32.mrf.mxu0
        %v565 = vadd.f32 0.0, %v564
        %v566 = vpop.f32.mrf.mxu0
        %v567 = vadd.f32 0.0, %v566
        %568 = vdwg.mxu0
        %569 = vmatpush.bf16.msra.mxu0 %v506
        %570 = vmatpush.bf16.msra.mxu0 %v505
        %571 = vmatpush.bf16.msra.mxu0 %v504
        %572 = vmatpush.bf16.msra.mxu0 %v503
        %573 = vmatpush.bf16.msra.mxu0 %v502
        %574 = vmatpush.bf16.msra.mxu0 %v501
        %575 = vmatpush.bf16.msra.mxu0 %v500
        %576 = vmatpush.bf16.msra.mxu0 %v499
        %577 = vmatmul.bf16.gmra.mxu0 %v356
        %v578 = vpop.f32.mrf.mxu0
        %v579 = vadd.f32 %v565, %v578
        %v580 = vpop.f32.mrf.mxu0
        %v581 = vadd.f32 %v567, %v580
        %582 = vdwg.mxu0
        %583 = vmatpush.bf16.msra.mxu0 %v514
        %584 = vmatpush.bf16.msra.mxu0 %v513
        %585 = vmatpush.bf16.msra.mxu0 %v512
        %586 = vmatpush.bf16.msra.mxu0 %v511
        %587 = vmatpush.bf16.msra.mxu0 %v510
        %588 = vmatpush.bf16.msra.mxu0 %v509
        %589 = vmatpush.bf16.msra.mxu0 %v508
        %590 = vmatpush.bf16.msra.mxu0 %v507
        %591 = vmatmul.bf16.gmra.mxu0 %v357
        %v592 = vpop.f32.mrf.mxu0
        %v593 = vadd.f32 %v579, %v592
        %v594 = vpop.f32.mrf.mxu0
        %v595 = vadd.f32 %v581, %v594
        %596 = vdwg.mxu0
        %597 = vmatpush.bf16.msra.mxu0 %v522
        %598 = vmatpush.bf16.msra.mxu0 %v521
        %599 = vmatpush.bf16.msra.mxu0 %v520
        %600 = vmatpush.bf16.msra.mxu0 %v519
        %601 = vmatpush.bf16.msra.mxu0 %v518
        %602 = vmatpush.bf16.msra.mxu0 %v517
        %603 = vmatpush.bf16.msra.mxu0 %v516
        %604 = vmatpush.bf16.msra.mxu0 %v515
        %605 = vmatmul.bf16.gmra.mxu0 %v358
        %v606 = vpop.f32.mrf.mxu0
        %v607 = vadd.f32 %v593, %v606
        %v608 = vpop.f32.mrf.mxu0
        %v609 = vadd.f32 %v595, %v608
        %610 = vdwg.mxu0
        %v611 = vadd.f32 %v273, %v607
        %v612 = vadd.f32 %v274, %v609
        %613 = vst [vmem:[#allocation2] sm:$0xff] %v611
        %614 = vst [vmem:[#allocation2 + $0x8] sm:$0xff] %v612
        %p615 = scmp.eq.s32.totalorder %s21, 1
        // Predicated region
        $region64: #{model_with_temperature_forward.1} parent=54 // pred_check
          %p616 = pneg %p615
        $region65: #{model_with_temperature_forward.1} parent=54 // pred_check_branch
          %618 = sbr.rel (%p616) target = $region67
        $region66: #{model_with_temperature_forward.1} parent=54 // pred_region
          %s619 = sld [smem:[#allocation3]]
          %v620 = vstv %s619
          %v621 = vrcp.pop %v620
          %v622 = vmul.f32 %v620, %v621
          %v623 = vsub.f32 1.0, %v622
          %v624 = vmul.f32 %v621, %v623
          %v625 = vadd.f32 %v621, %v624
          %vm626 = vweird.f32 %v620
          %vm627 = vweird.f32 %v621
          %vm628 = vmor %vm626, %vm627
          %v629 = vsel %vm628, %v621, %v625
          %v630 = vand.u32 2147483647, %v620
          %vm631 = vcmp.eq.f32.partialorder %v630, 8.507059e+37
          %v632 = vand.u32 %v620, 2147483648
          %v633 = vor.u32 1.1754944e-38, %v632
          %v634 = vsel %vm631, %v633, %v629
          %s635 = vtos %v634
          %v636 = vld [vmem:[#allocation2] sm:$0xff]
          %v637 = vld [vmem:[#allocation2 + $0x8] sm:$0xff]
          %v638 = vld [vmem:[%s3] sm:$0x1]
          %v640 = vperm.slane %v638, 0
          %v642 = vadd.f32 %v636, %v640
          %v643 = vadd.f32 %v637, %v640
          %v644 = vstv %s635
          %v645 = vmul.f32 %v642, %v644
          %v646 = vmul.f32 %v643, %v644
          %647 = vst [vmem:[%s265] sm:$0xff] %v645
          %648 = vst [vmem:[%s265 + $0x8] sm:$0xff] %v646
        $region67: #{model_with_temperature_forward.1} parent=54 // pred_fallthru
          _
        %s649 = smul.u32 2, %s20
        %p650 = scmp.lt.s32.totalorder %s649, 1
        %s651 = scalar_select %p650, %s649, 1
        %s652 = smul.addr %s651, 8
        %s653 = scalar_lea.vmem %s4, %s652
        // Predicated region
        $region68: #{model_with_temperature_forward.1} parent=54 // pred_check
          %p654 = pneg %p142
        $region69: #{model_with_temperature_forward.1} parent=54 // pred_check_branch
          %656 = sbr.rel (%p654) target = $region71
        $region70: #{model_with_temperature_forward.1} parent=54 // pred_region
          %s657 = smul.u32 2, %s20
        $region71: #{model_with_temperature_forward.1} parent=54 // pred_fallthru
          _
        // Predicated region
        $region72: #{model_with_temperature_forward.1} parent=54 // pred_check
          %p658 = pneg %p142
        $region73: #{model_with_temperature_forward.1} parent=54 // pred_check_branch
          %660 = sbr.rel (%p658) target = $region75
        $region74: #{model_with_temperature_forward.1} parent=54 // pred_region
          %s661 = smul.u32 2, %s20
          %p662 = scmp.lt.s32.totalorder %s661, 1
          %s663 = scalar_select %p662, %s661, 1
          %s664 = smul.addr %s663, 8
          %s665 = scalar_lea.vmem %s4, %s664
        $region75: #{model_with_temperature_forward.1} parent=54 // pred_fallthru
          _
      $region55: #{model_with_temperature_forward.1} parent=5 // pred_fallthru
        _
      %p666 = scmp.le.s32.totalorder 2, %s11
      // Predicated region
      $region76: #{model_with_temperature_forward.1} parent=5 // pred_check
        %p667 = pneg %p666
      $region77: #{model_with_temperature_forward.1} parent=5 // pred_check_branch
        %669 = sbr.rel (%p667) target = $region79
      $region78: #{model_with_temperature_forward.1} parent=5 // pred_region
        %s670 = ssub.s32 %s11, 2
      $region79: #{model_with_temperature_forward.1} parent=5 // pred_fallthru
        _
    $region6: #{model_with_temperature_forward.1} parent=1 // loop_footer
      %s15 = sadd.s32 1, %s11
    $region7: #{model_with_temperature_forward.1} parent=1 // loop_footer_branch
      %10 = sbr.rel target = $region3
    $region8: #{model_with_temperature_forward.1} parent=1 // loop_exit
      _

</llo_original>
